<compile_context>
chip_gen: v6e
topology: v6e:2x2x1
jax: 0.10.0
libtpu: 0.0.40
codegen_flags: <defaults>
</compile_context>

<pallas_src>
import functools

import jax
import jax.numpy as jnp
from jax.experimental import pallas as pl
from jax.experimental.pallas import tpu as pltpu


def _simam_kernel(x_ref, o_ref, *, inv_n, e_lambda):
    # x_ref block: (ROWS, HW); each row is one (b, c) channel.  All reductions
    # are per-row along the lane axis, so out-of-range boundary rows are
    # independent garbage that never affects valid rows.
    x = x_ref[...].astype(jnp.float32)
    mu = jnp.mean(x, axis=-1, keepdims=True)                  # mean over H*W
    d = x - mu
    d2 = d * d                                                # (x - mu)^2
    s = jnp.sum(d2, axis=-1, keepdims=True)                   # sum over H*W
    # One reciprocal per ROW (EUP, shape (ROWS, 1)) instead of a broadcasted
    # per-element divide; small (~1e-3) drift vs an exact divide is expected.
    coef = pl.reciprocal(4.0 * (s * inv_n + e_lambda), approx=True)
    y = d2 * coef + 0.5
    o_ref[...] = (x * jax.nn.sigmoid(y)).astype(o_ref.dtype)


def _choose_block_rows(rows, hw, itemsize):
    """Row-tile so the f32 compute tile is ~2 MiB, respecting sublane packing."""
    sub = max(8, 32 // max(int(itemsize), 1))        # f32->8, bf16->16, 8-bit->32
    target_bytes = 2 * 1024 * 1024                   # per f32 compute tile
    br = max(sub, (target_bytes // (hw * 4)) // sub * sub)
    rows_rounded = ((rows + sub - 1) // sub) * sub   # never exceed the row count
    return min(br, rows_rounded)


def simam(x, e_lambda=1e-3, block_rows=None):
    """SimAM forward.  x: (B, C, H, W), float dtype.  Returns same shape/dtype."""
    b, c, h, w = x.shape
    n = h * w - 1
    # 1x1 spatial maps hit div-by-zero exactly like the PyTorch module would.
    inv_n = (1.0 / n) if n > 0 else float("inf")
    rows = b * c
    hw = h * w
    itemsize = jnp.dtype(x.dtype).itemsize

    if block_rows is None:
        block_rows = _choose_block_rows(rows, hw, itemsize)

    x2d = x.reshape(rows, hw)                        # contiguous reshape, no HBM copy
    grid = (pl.cdiv(rows, block_rows),)              # boundary block masked by Pallas

    kernel = functools.partial(_simam_kernel, inv_n=inv_n, e_lambda=e_lambda)

    out2d = pl.pallas_call(
        kernel,
        out_shape=jax.ShapeDtypeStruct((rows, hw), x.dtype),
        grid_spec=pltpu.PrefetchScalarGridSpec(
            num_scalar_prefetch=0,
            grid=grid,
            in_specs=[pl.BlockSpec((block_rows, hw), lambda i: (i, 0))],
            out_specs=pl.BlockSpec((block_rows, hw), lambda i: (i, 0)),
        ),
        compiler_params=pltpu.CompilerParams(
            dimension_semantics=("parallel",),       # megacore sharding on v7x
            vmem_limit_bytes=32 * 1024 * 1024,       # explicit budget, safe on v5e/v6e/v7x
        ),
        cost_estimate=pl.CostEstimate(
            flops=8 * rows * hw,
            transcendentals=rows * hw,
            bytes_accessed=2 * rows * hw * itemsize,
        ),
    )(x2d)

    return out2d.reshape(b, c, h, w)


def simam_ref(x, e_lambda=1e-3):
    """Pure-JAX reference mirroring the PyTorch forward (NCHW)."""
    b, c, h, w = x.shape
    n = w * h - 1
    mu = jnp.mean(x, axis=(2, 3), keepdims=True)
    d2 = (x - mu) ** 2
    y = d2 / (4.0 * (jnp.sum(d2, axis=(2, 3), keepdims=True) / n + e_lambda)) + 0.5
    return x * jax.nn.sigmoid(y)


if __name__ == "__main__":
    key = jax.random.PRNGKey(0)

    # Main shape from the module spec (H*W = 256, lane-dense path).
    B, C, H, W = 2, 4, 16, 16
    x = jax.random.normal(key, (B, C, H, W), dtype=jnp.float32)
    out = jax.block_until_ready(simam(x))
    ref = simam_ref(x)
    assert out.shape == x.shape and out.dtype == x.dtype
    # approx reciprocal -> small drift vs the exact reference
    assert jnp.allclose(out, ref, atol=5e-3, rtol=5e-3), "f32 mismatch vs reference"

    # Odd shape: rows not a multiple of the block and H*W not a multiple of
    # 128 — exercises the cdiv boundary block (no host-side padding copy).
    x2 = jax.random.normal(jax.random.PRNGKey(1), (2, 3, 7, 7), dtype=jnp.float32)
    out2 = jax.block_until_ready(simam(x2))
    assert jnp.allclose(out2, simam_ref(x2), atol=5e-3, rtol=5e-3), "odd-shape mismatch"

    print("KERNEL_OK")
</pallas_src>

<mosaic_0001>
module attributes {stable_mosaic.version = 11 : i64} {
  func.func @_simam_kernel(%arg0: i32, %arg1: memref<8x256xf32, #tpu.memory_space<vmem>>, %arg2: memref<8x256xf32, #tpu.memory_space<vmem>>) attributes {dimension_semantics = [#tpu.dimension_semantics<parallel>], iteration_bounds = array<i64: 1>, scalar_prefetch = 0 : i64, scratch_operands = 0 : i64, tpu.core_type = #tpu.core_type<tc>, window_params = [{transform_indices = @transform_0, window_bounds = array<i64: 8, 256>}, {transform_indices = @transform_1, window_bounds = array<i64: 8, 256>}]} {
    %c0 = arith.constant 0 : index
    %c0_0 = arith.constant 0 : index
    %0 = vector.load %arg1[%c0, %c0_0] : memref<8x256xf32, #tpu.memory_space<vmem>>, vector<8x256xf32>
    %cst = arith.constant dense<0.000000e+00> : vector<8xf32>
    %1 = vector.multi_reduction <add>, %0, %cst [1] : vector<8x256xf32> to vector<8xf32>
    %2 = vector.shape_cast %1 : vector<8xf32> to vector<8x1xf32>
    %cst_1 = arith.constant 2.560000e+02 : f32
    %3 = vector.broadcast %cst_1 : f32 to vector<8x1xf32>
    %4 = arith.divf %2, %3 : vector<8x1xf32>
    %5 = vector.broadcast %4 : vector<8x1xf32> to vector<8x256xf32>
    %6 = arith.subf %0, %5 : vector<8x256xf32>
    %7 = arith.mulf %6, %6 : vector<8x256xf32>
    %cst_2 = arith.constant dense<0.000000e+00> : vector<8xf32>
    %8 = vector.multi_reduction <add>, %7, %cst_2 [1] : vector<8x256xf32> to vector<8xf32>
    %9 = vector.shape_cast %8 : vector<8xf32> to vector<8x1xf32>
    %cst_3 = arith.constant 0.00392156886 : f32
    %10 = vector.broadcast %cst_3 : f32 to vector<8x1xf32>
    %11 = arith.mulf %9, %10 : vector<8x1xf32>
    %cst_4 = arith.constant 1.000000e-03 : f32
    %12 = vector.broadcast %cst_4 : f32 to vector<8x1xf32>
    %13 = arith.addf %11, %12 : vector<8x1xf32>
    %cst_5 = arith.constant 4.000000e+00 : f32
    %14 = vector.broadcast %cst_5 : f32 to vector<8x1xf32>
    %15 = arith.mulf %14, %13 : vector<8x1xf32>
    %16 = tpu.reciprocal %15 {approx = true} : vector<8x1xf32> -> vector<8x1xf32>
    %17 = vector.broadcast %16 : vector<8x1xf32> to vector<8x256xf32>
    %18 = arith.mulf %7, %17 : vector<8x256xf32>
    %cst_6 = arith.constant 5.000000e-01 : f32
    %19 = vector.broadcast %cst_6 : f32 to vector<8x256xf32>
    %20 = arith.addf %18, %19 : vector<8x256xf32>
    %21 = arith.negf %20 : vector<8x256xf32>
    %22 = math.exp %21 : vector<8x256xf32>
    %cst_7 = arith.constant 1.000000e+00 : f32
    %23 = vector.broadcast %cst_7 : f32 to vector<8x256xf32>
    %24 = arith.addf %23, %22 : vector<8x256xf32>
    %25 = arith.divf %23, %24 : vector<8x256xf32>
    %26 = arith.mulf %0, %25 : vector<8x256xf32>
    %c0_8 = arith.constant 0 : index
    %c0_9 = arith.constant 0 : index
    %27 = vector.load %arg2[%c0_8, %c0_9] : memref<8x256xf32, #tpu.memory_space<vmem>>, vector<8x256xf32>
    tpu.vector_store %arg2[%c0_8, %c0_9], %26 {strides = array<i32>} : memref<8x256xf32, #tpu.memory_space<vmem>>, vector<8x256xf32>,
    return
  }
  func.func @transform_0(%arg0: i32) -> (i32, i32) {
    %c0_i32 = arith.constant 0 : i32
    %c0_i32_0 = arith.constant 0 : i32
    return %arg0, %c0_i32 : i32, i32
  }
  func.func @transform_1(%arg0: i32) -> (i32, i32) {
    %c0_i32 = arith.constant 0 : i32
    %c0_i32_0 = arith.constant 0 : i32
    return %arg0, %c0_i32 : i32, i32
  }
}

</mosaic_0001>

<llo_original>
// kernel: tpu_custom_call.1
$region0: #{tpu_custom_call.1}
  #allocation0 [shape = 'u32[]', space=smem, size = 0x4, offset = 0x4, fixed_abs, tag = 'smem constant byte address 0x4 - core index']
  #allocation1 [shape = 'u32[144,128]{1,0:T(1,128)}', space=vmem, size = 0x12000, scoped, tag = 'internal scratch']
  %s0 = inlined_call_operand.hbm [shape: f32[8,256], index: 0, kind: input, shape index: {}]
  %s1 = inlined_call_operand.hbm [shape: f32[8,256], index: 1, kind: output, shape index: {}]
  %s2 = sld [smem:[#allocation0]]
  $region18: #{tpu_custom_call.1} parent=0
    _
  %s4 = ssub.s32 1, %s2
  %s5 = scalar_select 0, %s4, %s2
  $region1: #{tpu_custom_call.1} parent=0
    #allocation2 [shape = 'u8[8192]{0}', space=vmem, size = 0x2000, scoped, tag = 'input window, operand 0, single buffered']
    #allocation3 [shape = 's32[1]{0}', space=sflag, size = 0x4, scoped, tag = 'scoped memory for tpu_custom_call.1']
    #allocation4 [shape = 's32[1]{0}', space=sflag, size = 0x4, scoped, tag = 'scoped memory for tpu_custom_call.1']
    #allocation5 [shape = 'u8[8192]{0}', space=vmem, size = 0x2000, scoped, tag = 'output window, operand 0, single buffered']
    %6 = vsyncpa [#allocation3], 0
    %7 = vsyncpa [#allocation4], 0
    // Predicated region
    $region2: #{tpu_custom_call.1} parent=1 // pred_check
      _
    $region3: #{tpu_custom_call.1} parent=1 // pred_check_branch
      %9 = sbr.rel (0) target = $region5
    $region4: #{tpu_custom_call.1} parent=1 // pred_region
      %s11 = ssub.s32 256, 256
      %12 = vsyncadd [#allocation3], %s11
      %s14 = sshll.u32 [#allocation2], 4
      %s15 = int_to_ptr.vmem [resolvable:$true] %s14
      %17 = dma.hbm_to_vmem [thread:$0]  %s0, 256, %s15, [#allocation3]
    $region5: #{tpu_custom_call.1} parent=1 // pred_fallthru
      _
    // Predicated region
    $region6: #{tpu_custom_call.1} parent=1 // pred_check
      _
    $region7: #{tpu_custom_call.1} parent=1 // pred_check_branch
      %19 = sbr.rel (0) target = $region9
    $region8: #{tpu_custom_call.1} parent=1 // pred_region
      %20 = dma.done [#allocation3], 256
    $region9: #{tpu_custom_call.1} parent=1 // pred_fallthru
      _
    %v21 = vld [vmem:[#allocation2] sm:$0xff]
    %v22 = vld [vmem:[#allocation2 + $0x8] sm:$0xff]
    %v23 = vadd.f32 %v21, %v22
    %24 = vadd.xlane.f32.xlu0 %v23
    %v25 = vpop.xlane.xlu0 %24
    %v26 = vrcp.pop 256.0
    %v27 = vmul.f32 %v25, %v26
    %v28 = vsub.f32 %v21, %v27
    %v29 = vsub.f32 %v22, %v27
    %v30 = vmul.f32 %v28, %v28
    %v31 = vmul.f32 %v29, %v29
    %v32 = vadd.f32 %v30, %v31
    %33 = vadd.xlane.f32.xlu0 %v32
    %v34 = vpop.xlane.xlu0 %33
    %v35 = vmul.f32 %v34, 0.003921569
    %v36 = vadd.f32 %v35, 0.001
    %v37 = vmul.f32 %v36, 4.0
    %v38 = vrcp.pop %v37
    %v39 = vmul.f32 %v30, %v38
    %v40 = vmul.f32 %v31, %v38
    %v41 = vadd.f32 %v39, 0.5
    %v42 = vadd.f32 %v40, 0.5
    %v43 = vxor.u32 %v41, 2147483648
    %v44 = vxor.u32 %v42, 2147483648
    %v45 = vmul.f32 %v43, 1.442695
    %v46 = vpow.pop %v45
    %v47 = vmul.f32 %v44, 1.442695
    %v48 = vpow.pop %v47
    %v49 = vadd.f32 %v46, 1.0
    %v50 = vadd.f32 %v48, 1.0
    %v51 = vrcp.pop %v49
    %v52 = vmul.f32 1.0, %v51
    %v53 = vrcp.pop %v50
    %v54 = vmul.f32 1.0, %v53
    %v55 = vmul.f32 %v21, %v52
    %v56 = vmul.f32 %v22, %v54
    %57 = vst [vmem:[#allocation5] sm:$0xff] %v55
    %58 = vst [vmem:[#allocation5 + $0x8] sm:$0xff] %v56
    // Predicated region
    $region10: #{tpu_custom_call.1} parent=1 // pred_check
      _
    $region11: #{tpu_custom_call.1} parent=1 // pred_check_branch
      %60 = sbr.rel (0) target = $region13
    $region12: #{tpu_custom_call.1} parent=1 // pred_region
      %s62 = ssub.s32 256, 256
      %63 = vsyncadd [#allocation4], %s62
      %s65 = sshll.u32 [#allocation5], 4
      %s66 = int_to_ptr.vmem [resolvable:$true] %s65
      %68 = dma.vmem_to_hbm [thread:$0]  %s66, 256, %s1, [#allocation4]
    $region13: #{tpu_custom_call.1} parent=1 // pred_fallthru
      _
    // Predicated region
    $region14: #{tpu_custom_call.1} parent=1 // pred_check
      _
    $region15: #{tpu_custom_call.1} parent=1 // pred_check_branch
      %70 = sbr.rel (0) target = $region17
    $region16: #{tpu_custom_call.1} parent=1 // pred_region
      %71 = dma.done [#allocation4], 256
    $region17: #{tpu_custom_call.1} parent=1 // pred_fallthru
      _
    %72 = vsyncpa [#allocation3], 1
    %73 = vsyncpa [#allocation4], 1

</llo_original>
